<compile_context>
chip_gen: v7x
topology: tpu7x:2x2x1
jax: 0.10.0
libtpu: 0.0.40
codegen_flags: <defaults>
</compile_context>

<pallas_src>
import functools

import jax
import jax.numpy as jnp
import numpy as np
from jax.experimental import pallas as pl
from jax.experimental.pallas import tpu as pltpu

LANES = 128  # output / packed-weight lane width


def _round_up(n, m):
    return ((n + m - 1) // m) * m


# ----------------------------- Pallas kernel --------------------------------
def crnet_kernel(x_ref, w_ref, br2_ref, out_ref, *, C, K, D, E,
                 sec_v, sec_c, sec_s):
    f32 = jnp.float32
    lanes = out_ref.shape[1]

    def dot(a, b):
        return jnp.dot(a, b, preferred_element_type=f32)

    def relu(a):
        return jnp.maximum(a, 0.0)

    ED = E * D
    # ---- packed parameter views (static, 8-row-aligned, lane-offset-0 slices) ----
    r_w1, r_w2, r_we = 0, D, 3 * D
    r_a, r_b, r_r2, r_bias = 4 * D, 5 * D, 5 * D + ED, 6 * D + ED
    w1f = w_ref[r_w1:r_w1 + D, 0:2 * D]            # fused mapper fc1   [D, 2D]
    w2f = w_ref[r_w2:r_w2 + 2 * D, 0:2 * D]        # fused mapper fc2   [2D, 2D] block-diag
    we_s = w_ref[r_we:r_we + D, 0:ED]              # experts, lane-stacked [D, E*D]
    wr1a = w_ref[r_a:r_a + D, 0:D]                 # relation fc1 (visual half)  [D, D]
    wr1b_st = w_ref[r_b:r_b + ED, 0:D]             # tile(wr1b,(E,1)) = expert-sum folded [E*D, D]
    wr2rep = w_ref[r_r2:r_r2 + D, :]               # wr2 replicated over lanes [D, 128]
    bias = w_ref[r_bias:r_bias + 8, :]             # one aligned [8, 128] bias block
    b1f = bias[0:1, 0:2 * D]                       # [b1v | b1s]
    b2f = bias[1:2, 0:2 * D]                       # [b2v | b2s]
    be_row = bias[2:3, 0:ED]                       # expert biases, lane-stacked
    br1 = bias[3:4, 0:D]

    # ---- fused visual + semantic mapper (one pass over all packed rows) ----
    # TODO(synk): Dropout(0.1) is stochastic in train mode; implemented as identity (eval).
    x = x_ref[...]                                 # [rows_x, D]
    hid = relu(dot(x, w1f) + b1f)                  # [rows_x, 2D]
    y = dot(hid, w2f) + b2f                        # [rows_x, 2D], halves independent
    y_v = y[0:sec_v, :]
    y_c = y[sec_v:sec_v + sec_c, :]
    y_s = y[sec_v + sec_c:sec_v + sec_c + sec_s, :]
    vc = y_v[:, 0:D]                               # visual_common   (pad rows never read)
    cc = y_c[:, 0:D]                               # cluster_common
    sc = y_s[:, D:2 * D]                           # semantic_common

    # ---- CooperationModule: one merged expert matmul + static K unroll ----
    lhs_e = jnp.concatenate([sc, cc], axis=0)      # [sec_s + sec_c, D]
    ex = dot(lhs_e, we_s)                          # [sec_s + sec_c, E*D]
    se = ex[0:sec_s, :]
    ce = ex[sec_s:sec_s + sec_c, :]
    zk = relu(se - ce[0:1, :] + be_row)            # [sec_s, E*D]
    for k in range(1, K):                          # static unroll; pad cluster rows excluded
        zk = zk + relu(se - ce[k:k + 1, :] + be_row)

    # ---- RelationModule fc1 (expert-sum folded into wr1b_st) ----
    h1 = dot(vc, wr1a)                             # [sec_v, D]
    h2 = dot(zk, wr1b_st)                          # [sec_s, D]  == comb @ wr1b

    # ---- RelationModule fc2 on the MXU, lane-dense output ----
    lane = jax.lax.broadcasted_iota(jnp.int32, (sec_v, lanes), 1)
    acc = jnp.zeros((sec_v, lanes), f32)
    for c in range(C):                             # static unroll over classes
        hc = relu(h1 + (h2[c:c + 1, :] + br1))     # [sec_v, D]
        vals = dot(hc, wr2rep)                     # [sec_v, 128] (all lanes identical)
        acc = acc + jnp.where(lane == c, vals, 0.0)
    out_ref[...] = acc + br2_ref[0, 0]             # full unmasked [sec_v, 128] store


# --------------------------- host-side packing -------------------------------
def pack_params(p):
    """Pack the 14 CRNet parameter arrays into one [6D+E*D+8, 128] buffer + SMEM scalar."""
    f32 = jnp.float32
    D = p["w2v"].shape[0]
    E = p["we"].shape[0]
    vis, sem = p["w1v"].shape[0], p["w1s"].shape[0]
    assert vis <= D and sem <= D, "input dims must fit the zero-padded common width"
    assert D % 8 == 0 and 2 * D <= LANES and E * D <= LANES

    def lane_pad(m):
        r, c = m.shape
        return jnp.zeros((r, LANES), f32).at[:, :c].set(m.astype(f32))

    # fused mapper fc1: [w1v | w1s] with zero-padded input rows
    w1f = jnp.zeros((D, 2 * D), f32)
    w1f = w1f.at[:vis, :D].set(p["w1v"])
    w1f = w1f.at[:sem, D:].set(p["w1s"])
    # fused mapper fc2: block-diagonal
    w2f = jnp.zeros((2 * D, 2 * D), f32)
    w2f = w2f.at[:D, :D].set(p["w2v"])
    w2f = w2f.at[D:, D:].set(p["w2s"])
    # experts lane-stacked [D, E*D]
    we_s = jnp.transpose(p["we"], (1, 0, 2)).reshape(D, E * D)
    # relation fc1 halves; the expert-sum selector is absorbed into wr1b via tiling
    wr1a = p["wr1"][:D]
    wr1b_stack = jnp.tile(p["wr1"][D:], (E, 1))                  # [E*D, D]
    # relation fc2 weight replicated across all output lanes [D, 128]
    wr2rep = jnp.tile(jnp.reshape(p["wr2"], (D, 1)), (1, LANES))
    # bias block [8, 128]
    bias = jnp.zeros((8, LANES), f32)
    bias = bias.at[0:1, :2 * D].set(jnp.concatenate([p["b1v"], p["b1s"]], axis=1))
    bias = bias.at[1:2, :2 * D].set(jnp.concatenate([p["b2v"], p["b2s"]], axis=1))
    bias = bias.at[2:3, :E * D].set(p["be"].reshape(1, E * D))
    bias = bias.at[3:4, :D].set(p["br1"])

    w_packed = jnp.concatenate(
        [lane_pad(w1f), lane_pad(w2f), lane_pad(we_s), lane_pad(wr1a),
         lane_pad(wr1b_stack), wr2rep.astype(f32), bias], axis=0)   # [6D+E*D+8, 128]
    br2 = jnp.reshape(p["br2"], (1, 1)).astype(f32)                 # SMEM scalar
    return w_packed, br2


@functools.partial(jax.jit, static_argnames=("D", "E"))
def crnet_forward(visual_features, class_prototypes, cluster_centers, w_packed, br2, *, D, E):
    B, vis = visual_features.shape
    C, sem = class_prototypes.shape
    K = cluster_centers.shape[0]
    # TODO(synk): only the pairwise (B != C) relation branch is implemented; the B == C
    # rowwise branch of CRNet.forward is not handled here.
    assert B != C and K >= 1 and C <= LANES

    sec_v, sec_c, sec_s = _round_up(B, 8), _round_up(K, 8), _round_up(C, 8)
    rows_x = sec_v + sec_c + sec_s

    # Single zero-padded activation buffer, every section 8-sublane aligned.
    x = jnp.zeros((rows_x, D), jnp.float32)
    x = x.at[0:B, 0:vis].set(visual_features.astype(jnp.float32))
    x = x.at[sec_v:sec_v + K, 0:vis].set(cluster_centers.astype(jnp.float32))
    x = x.at[sec_v + sec_c:sec_v + sec_c + C, 0:sem].set(class_prototypes.astype(jnp.float32))

    flops = int(2 * rows_x * D * (2 * D)                 # fused mapper fc1
                + 2 * rows_x * (2 * D) * (2 * D)         # fused mapper fc2
                + 2 * (sec_s + sec_c) * D * (E * D)      # merged expert matmul
                + 2 * sec_s * (E * D) * D                # expert-sum + relation fc1 (semantic)
                + 2 * sec_v * D * D                      # relation fc1 (visual)
                + 2 * C * sec_v * D * LANES)             # relation fc2 (lane-replicated)
    bytes_accessed = int(4 * (x.size + w_packed.size + br2.size + sec_v * LANES))

    kernel = functools.partial(crnet_kernel, C=C, K=K, D=D, E=E,
                               sec_v=sec_v, sec_c=sec_c, sec_s=sec_s)
    vmem = pl.BlockSpec(memory_space=pltpu.MemorySpace.VMEM)
    smem = pl.BlockSpec(memory_space=pltpu.MemorySpace.SMEM)
    out = pl.pallas_call(
        kernel,
        out_shape=jax.ShapeDtypeStruct((sec_v, LANES), jnp.float32),
        in_specs=[vmem, vmem, smem],
        out_specs=vmem,
        cost_estimate=pl.CostEstimate(flops=flops, transcendentals=0,
                                      bytes_accessed=bytes_accessed),
    )(x, w_packed, br2)
    return out[:B, :C]


# --------------------------- pure-JAX reference ------------------------------
def crnet_reference(vf, cp, ct, p):
    def vmap_(x):
        h = jnp.maximum(x @ p["w1v"] + p["b1v"], 0.0)
        return h @ p["w2v"] + p["b2v"]

    def smap_(x):
        h = jnp.maximum(x @ p["w1s"] + p["b1s"], 0.0)
        return h @ p["w2s"] + p["b2s"]

    vc, sc, cc = vmap_(vf), smap_(cp), vmap_(ct)
    C, D = sc.shape
    K = cc.shape[0]
    off = (sc[:, None, :] - cc[None, :, :]).reshape(C * K, D)
    comb = jnp.zeros((C, D), jnp.float32)
    for e in range(p["we"].shape[0]):
        eo = jnp.maximum(off @ p["we"][e] + p["be"][e], 0.0)
        comb = comb + eo.reshape(C, K, D).sum(axis=1)
    sc = comb
    h1 = vc @ p["wr1"][:D]
    h2 = sc @ p["wr1"][D:]
    h = jnp.maximum(h1[:, None, :] + h2[None, :, :] + p["br1"], 0.0)
    rel = jnp.sum(h * p["wr2"][None, :, :], axis=-1) + p["br2"][0, 0]
    return rel


# ------------------------------- main ----------------------------------------
if __name__ == "__main__":
    # small, deterministic shapes consistent with the module's forward
    B, C, K = 4, 5, 3                 # batch, num_classes, num_clusters (B != C -> pairwise path)
    VIS_DIM, SEM_DIM, COMMON, N_EXP = 16, 24, 32, 4

    key = jax.random.PRNGKey(0)
    ks = list(jax.random.split(key, 20))

    def rnd(k, shape, scale=0.1):
        return (scale * jax.random.normal(k, shape)).astype(jnp.float32)

    params = {
        # visual_mapper: Linear(VIS->COMMON), ReLU, Dropout, Linear(COMMON->COMMON)
        "w1v": rnd(ks[0], (VIS_DIM, COMMON)), "b1v": rnd(ks[1], (1, COMMON)),
        "w2v": rnd(ks[2], (COMMON, COMMON)),  "b2v": rnd(ks[3], (1, COMMON)),
        # semantic_mapper: Linear(SEM->COMMON), ReLU, Dropout, Linear(COMMON->COMMON)
        "w1s": rnd(ks[4], (SEM_DIM, COMMON)), "b1s": rnd(ks[5], (1, COMMON)),
        "w2s": rnd(ks[6], (COMMON, COMMON)),  "b2s": rnd(ks[7], (1, COMMON)),
        # cooperation experts: N_EXP x Linear(COMMON -> COMMON)
        "we": rnd(ks[8], (N_EXP, COMMON, COMMON)), "be": rnd(ks[9], (N_EXP, COMMON)),
        # relation: Linear(2*COMMON -> COMMON), Linear(COMMON -> 1)
        "wr1": rnd(ks[10], (2 * COMMON, COMMON)), "br1": rnd(ks[11], (1, COMMON)),
        "wr2": rnd(ks[12], (1, COMMON)),          "br2": rnd(ks[13], (1, 1)),
    }

    visual_features = rnd(ks[14], (B, VIS_DIM), scale=1.0)
    class_prototypes = rnd(ks[15], (C, SEM_DIM), scale=1.0)
    cluster_centers = rnd(ks[16], (K, VIS_DIM), scale=1.0)

    w_packed, br2 = pack_params(params)

    out = crnet_forward(visual_features, class_prototypes, cluster_centers,
                        w_packed, br2, D=COMMON, E=N_EXP)
    out = jax.block_until_ready(out)

    ref = crnet_reference(visual_features, class_prototypes, cluster_centers, params)
    ref = jax.block_until_ready(ref)

    assert out.shape == (B, C), f"bad shape {out.shape}"
    np.testing.assert_allclose(np.asarray(out), np.asarray(ref), rtol=1e-3, atol=1e-3)
    print("KERNEL_OK")
</pallas_src>

<mosaic_0001>
module attributes {stable_mosaic.version = 11 : i64} {
  func.func @crnet_kernel(%arg0: memref<24x32xf32, #tpu.memory_space<vmem>>, %arg1: memref<328x128xf32, #tpu.memory_space<vmem>>, %arg2: memref<1x1xf32, #tpu.memory_space<smem>>, %arg3: memref<8x128xf32, #tpu.memory_space<vmem>>) attributes {dimension_semantics = [], scalar_prefetch = 0 : i64, scratch_operands = 0 : i64, tpu.core_type = #tpu.core_type<tc>} {
    %c0 = arith.constant 0 : index
    %c0_0 = arith.constant 0 : index
    %0 = vector.load %arg1[%c0, %c0_0] : memref<328x128xf32, #tpu.memory_space<vmem>>, vector<32x64xf32>
    %c32 = arith.constant 32 : index
    %c0_1 = arith.constant 0 : index
    %1 = vector.load %arg1[%c32, %c0_1] : memref<328x128xf32, #tpu.memory_space<vmem>>, vector<64x64xf32>
    %c96 = arith.constant 96 : index
    %c0_2 = arith.constant 0 : index
    %2 = vector.load %arg1[%c96, %c0_2] : memref<328x128xf32, #tpu.memory_space<vmem>>, vector<32x128xf32>
    %c128 = arith.constant 128 : index
    %c0_3 = arith.constant 0 : index
    %3 = vector.load %arg1[%c128, %c0_3] : memref<328x128xf32, #tpu.memory_space<vmem>>, vector<32x32xf32>
    %c160 = arith.constant 160 : index
    %c0_4 = arith.constant 0 : index
    %4 = vector.load %arg1[%c160, %c0_4] : memref<328x128xf32, #tpu.memory_space<vmem>>, vector<128x32xf32>
    %c288 = arith.constant 288 : index
    %c0_5 = arith.constant 0 : index
    %5 = vector.load %arg1[%c288, %c0_5] : memref<328x128xf32, #tpu.memory_space<vmem>>, vector<32x128xf32>
    %c320 = arith.constant 320 : index
    %c0_6 = arith.constant 0 : index
    %6 = vector.load %arg1[%c320, %c0_6] : memref<328x128xf32, #tpu.memory_space<vmem>>, vector<8x128xf32>
    %7 = vector.extract_strided_slice %6 {offsets = [0, 0], sizes = [1, 64], strides = [1, 1]} : vector<8x128xf32> to vector<1x64xf32>
    %8 = vector.extract_strided_slice %6 {offsets = [1, 0], sizes = [1, 64], strides = [1, 1]} : vector<8x128xf32> to vector<1x64xf32>
    %9 = vector.extract_strided_slice %6 {offsets = [2, 0], sizes = [1, 128], strides = [1, 1]} : vector<8x128xf32> to vector<1x128xf32>
    %10 = vector.extract_strided_slice %6 {offsets = [3, 0], sizes = [1, 32], strides = [1, 1]} : vector<8x128xf32> to vector<1x32xf32>
    %c0_7 = arith.constant 0 : index
    %c0_8 = arith.constant 0 : index
    %11 = vector.load %arg0[%c0_7, %c0_8] : memref<24x32xf32, #tpu.memory_space<vmem>>, vector<24x32xf32>
    %cst = arith.constant dense<0.000000e+00> : vector<24x64xf32>
    %12 = tpu.matmul %11, %0, %cst {dimension_numbers = #tpu.dot_dimension_numbers<[1], [0], [0], [1], [0, 0, 1, 1], [], []>} : vector<24x32xf32>, vector<32x64xf32>, vector<24x64xf32> -> vector<24x64xf32>
    %13 = vector.broadcast %7 : vector<1x64xf32> to vector<24x64xf32>
    %14 = arith.addf %12, %13 : vector<24x64xf32>
    %cst_9 = arith.constant 0.000000e+00 : f32
    %15 = vector.broadcast %cst_9 : f32 to vector<24x64xf32>
    %16 = arith.maximumf %14, %15 : vector<24x64xf32>
    %cst_10 = arith.constant dense<0.000000e+00> : vector<24x64xf32>
    %17 = tpu.matmul %16, %1, %cst_10 {dimension_numbers = #tpu.dot_dimension_numbers<[1], [0], [0], [1], [0, 0, 1, 1], [], []>} : vector<24x64xf32>, vector<64x64xf32>, vector<24x64xf32> -> vector<24x64xf32>
    %18 = vector.broadcast %8 : vector<1x64xf32> to vector<24x64xf32>
    %19 = arith.addf %17, %18 : vector<24x64xf32>
    %20 = vector.extract_strided_slice %19 {offsets = [0, 0], sizes = [8, 64], strides = [1, 1]} : vector<24x64xf32> to vector<8x64xf32>
    %21 = vector.extract_strided_slice %19 {offsets = [8, 0], sizes = [8, 64], strides = [1, 1]} : vector<24x64xf32> to vector<8x64xf32>
    %22 = vector.extract_strided_slice %19 {offsets = [16, 0], sizes = [8, 64], strides = [1, 1]} : vector<24x64xf32> to vector<8x64xf32>
    %23 = vector.extract_strided_slice %20 {offsets = [0, 0], sizes = [8, 32], strides = [1, 1]} : vector<8x64xf32> to vector<8x32xf32>
    %24 = vector.extract_strided_slice %21 {offsets = [0, 0], sizes = [8, 32], strides = [1, 1]} : vector<8x64xf32> to vector<8x32xf32>
    %25 = vector.extract_strided_slice %22 {offsets = [0, 32], sizes = [8, 32], strides = [1, 1]} : vector<8x64xf32> to vector<8x32xf32>
    %26 = tpu.concatenate %25, %24 in 0 : vector<8x32xf32>, vector<8x32xf32> -> vector<16x32xf32>
    %cst_11 = arith.constant dense<0.000000e+00> : vector<16x128xf32>
    %27 = tpu.matmul %26, %2, %cst_11 {dimension_numbers = #tpu.dot_dimension_numbers<[1], [0], [0], [1], [0, 0, 1, 1], [], []>} : vector<16x32xf32>, vector<32x128xf32>, vector<16x128xf32> -> vector<16x128xf32>
    %28 = vector.extract_strided_slice %27 {offsets = [0, 0], sizes = [8, 128], strides = [1, 1]} : vector<16x128xf32> to vector<8x128xf32>
    %29 = vector.extract_strided_slice %27 {offsets = [8, 0], sizes = [8, 128], strides = [1, 1]} : vector<16x128xf32> to vector<8x128xf32>
    %30 = vector.extract_strided_slice %29 {offsets = [0, 0], sizes = [1, 128], strides = [1, 1]} : vector<8x128xf32> to vector<1x128xf32>
    %31 = vector.broadcast %30 : vector<1x128xf32> to vector<8x128xf32>
    %32 = arith.subf %28, %31 : vector<8x128xf32>
    %33 = vector.broadcast %9 : vector<1x128xf32> to vector<8x128xf32>
    %34 = arith.addf %32, %33 : vector<8x128xf32>
    %cst_12 = arith.constant 0.000000e+00 : f32
    %35 = vector.broadcast %cst_12 : f32 to vector<8x128xf32>
    %36 = arith.maximumf %34, %35 : vector<8x128xf32>
    %37 = vector.extract_strided_slice %29 {offsets = [1, 0], sizes = [1, 128], strides = [1, 1]} : vector<8x128xf32> to vector<1x128xf32>
    %38 = vector.broadcast %37 : vector<1x128xf32> to vector<8x128xf32>
    %39 = arith.subf %28, %38 : vector<8x128xf32>
    %40 = vector.broadcast %9 : vector<1x128xf32> to vector<8x128xf32>
    %41 = arith.addf %39, %40 : vector<8x128xf32>
    %cst_13 = arith.constant 0.000000e+00 : f32
    %42 = vector.broadcast %cst_13 : f32 to vector<8x128xf32>
    %43 = arith.maximumf %41, %42 : vector<8x128xf32>
    %44 = arith.addf %36, %43 : vector<8x128xf32>
    %45 = vector.extract_strided_slice %29 {offsets = [2, 0], sizes = [1, 128], strides = [1, 1]} : vector<8x128xf32> to vector<1x128xf32>
    %46 = vector.broadcast %45 : vector<1x128xf32> to vector<8x128xf32>
    %47 = arith.subf %28, %46 : vector<8x128xf32>
    %48 = vector.broadcast %9 : vector<1x128xf32> to vector<8x128xf32>
    %49 = arith.addf %47, %48 : vector<8x128xf32>
    %cst_14 = arith.constant 0.000000e+00 : f32
    %50 = vector.broadcast %cst_14 : f32 to vector<8x128xf32>
    %51 = arith.maximumf %49, %50 : vector<8x128xf32>
    %52 = arith.addf %44, %51 : vector<8x128xf32>
    %cst_15 = arith.constant dense<0.000000e+00> : vector<8x32xf32>
    %53 = tpu.matmul %23, %3, %cst_15 {dimension_numbers = #tpu.dot_dimension_numbers<[1], [0], [0], [1], [0, 0, 1, 1], [], []>} : vector<8x32xf32>, vector<32x32xf32>, vector<8x32xf32> -> vector<8x32xf32>
    %cst_16 = arith.constant dense<0.000000e+00> : vector<8x32xf32>
    %54 = tpu.matmul %52, %4, %cst_16 {dimension_numbers = #tpu.dot_dimension_numbers<[1], [0], [0], [1], [0, 0, 1, 1], [], []>} : vector<8x128xf32>, vector<128x32xf32>, vector<8x32xf32> -> vector<8x32xf32>
    %55 = tpu.iota {dimensions = array<i32: 1>} : vector<8x128xi32>
    %cst_17 = arith.constant 0.000000e+00 : f32
    %56 = vector.broadcast %cst_17 : f32 to vector<8x128xf32>
    %57 = vector.extract_strided_slice %54 {offsets = [0, 0], sizes = [1, 32], strides = [1, 1]} : vector<8x32xf32> to vector<1x32xf32>
    %58 = arith.addf %57, %10 : vector<1x32xf32>
    %59 = vector.broadcast %58 : vector<1x32xf32> to vector<8x32xf32>
    %60 = arith.addf %53, %59 : vector<8x32xf32>
    %cst_18 = arith.constant 0.000000e+00 : f32
    %61 = vector.broadcast %cst_18 : f32 to vector<8x32xf32>
    %62 = arith.maximumf %60, %61 : vector<8x32xf32>
    %cst_19 = arith.constant dense<0.000000e+00> : vector<8x128xf32>
    %63 = tpu.matmul %62, %5, %cst_19 {dimension_numbers = #tpu.dot_dimension_numbers<[1], [0], [0], [1], [0, 0, 1, 1], [], []>} : vector<8x32xf32>, vector<32x128xf32>, vector<8x128xf32> -> vector<8x128xf32>
    %c0_i32 = arith.constant 0 : i32
    %64 = vector.broadcast %c0_i32 : i32 to vector<8x128xi32>
    %65 = arith.cmpi eq, %55, %64 : vector<8x128xi32>
    %cst_20 = arith.constant 0.000000e+00 : f32
    %66 = vector.broadcast %cst_20 : f32 to vector<8x128xf32>
    %67 = arith.select %65, %63, %66 : vector<8x128xi1>, vector<8x128xf32>
    %68 = arith.addf %56, %67 : vector<8x128xf32>
    %69 = vector.extract_strided_slice %54 {offsets = [1, 0], sizes = [1, 32], strides = [1, 1]} : vector<8x32xf32> to vector<1x32xf32>
    %70 = arith.addf %69, %10 : vector<1x32xf32>
    %71 = vector.broadcast %70 : vector<1x32xf32> to vector<8x32xf32>
    %72 = arith.addf %53, %71 : vector<8x32xf32>
    %cst_21 = arith.constant 0.000000e+00 : f32
    %73 = vector.broadcast %cst_21 : f32 to vector<8x32xf32>
    %74 = arith.maximumf %72, %73 : vector<8x32xf32>
    %cst_22 = arith.constant dense<0.000000e+00> : vector<8x128xf32>
    %75 = tpu.matmul %74, %5, %cst_22 {dimension_numbers = #tpu.dot_dimension_numbers<[1], [0], [0], [1], [0, 0, 1, 1], [], []>} : vector<8x32xf32>, vector<32x128xf32>, vector<8x128xf32> -> vector<8x128xf32>
    %c1_i32 = arith.constant 1 : i32
    %76 = vector.broadcast %c1_i32 : i32 to vector<8x128xi32>
    %77 = arith.cmpi eq, %55, %76 : vector<8x128xi32>
    %cst_23 = arith.constant 0.000000e+00 : f32
    %78 = vector.broadcast %cst_23 : f32 to vector<8x128xf32>
    %79 = arith.select %77, %75, %78 : vector<8x128xi1>, vector<8x128xf32>
    %80 = arith.addf %68, %79 : vector<8x128xf32>
    %81 = vector.extract_strided_slice %54 {offsets = [2, 0], sizes = [1, 32], strides = [1, 1]} : vector<8x32xf32> to vector<1x32xf32>
    %82 = arith.addf %81, %10 : vector<1x32xf32>
    %83 = vector.broadcast %82 : vector<1x32xf32> to vector<8x32xf32>
    %84 = arith.addf %53, %83 : vector<8x32xf32>
    %cst_24 = arith.constant 0.000000e+00 : f32
    %85 = vector.broadcast %cst_24 : f32 to vector<8x32xf32>
    %86 = arith.maximumf %84, %85 : vector<8x32xf32>
    %cst_25 = arith.constant dense<0.000000e+00> : vector<8x128xf32>
    %87 = tpu.matmul %86, %5, %cst_25 {dimension_numbers = #tpu.dot_dimension_numbers<[1], [0], [0], [1], [0, 0, 1, 1], [], []>} : vector<8x32xf32>, vector<32x128xf32>, vector<8x128xf32> -> vector<8x128xf32>
    %c2_i32 = arith.constant 2 : i32
    %88 = vector.broadcast %c2_i32 : i32 to vector<8x128xi32>
    %89 = arith.cmpi eq, %55, %88 : vector<8x128xi32>
    %cst_26 = arith.constant 0.000000e+00 : f32
    %90 = vector.broadcast %cst_26 : f32 to vector<8x128xf32>
    %91 = arith.select %89, %87, %90 : vector<8x128xi1>, vector<8x128xf32>
    %92 = arith.addf %80, %91 : vector<8x128xf32>
    %93 = vector.extract_strided_slice %54 {offsets = [3, 0], sizes = [1, 32], strides = [1, 1]} : vector<8x32xf32> to vector<1x32xf32>
    %94 = arith.addf %93, %10 : vector<1x32xf32>
    %95 = vector.broadcast %94 : vector<1x32xf32> to vector<8x32xf32>
    %96 = arith.addf %53, %95 : vector<8x32xf32>
    %cst_27 = arith.constant 0.000000e+00 : f32
    %97 = vector.broadcast %cst_27 : f32 to vector<8x32xf32>
    %98 = arith.maximumf %96, %97 : vector<8x32xf32>
    %cst_28 = arith.constant dense<0.000000e+00> : vector<8x128xf32>
    %99 = tpu.matmul %98, %5, %cst_28 {dimension_numbers = #tpu.dot_dimension_numbers<[1], [0], [0], [1], [0, 0, 1, 1], [], []>} : vector<8x32xf32>, vector<32x128xf32>, vector<8x128xf32> -> vector<8x128xf32>
    %c3_i32 = arith.constant 3 : i32
    %100 = vector.broadcast %c3_i32 : i32 to vector<8x128xi32>
    %101 = arith.cmpi eq, %55, %100 : vector<8x128xi32>
    %cst_29 = arith.constant 0.000000e+00 : f32
    %102 = vector.broadcast %cst_29 : f32 to vector<8x128xf32>
    %103 = arith.select %101, %99, %102 : vector<8x128xi1>, vector<8x128xf32>
    %104 = arith.addf %92, %103 : vector<8x128xf32>
    %105 = vector.extract_strided_slice %54 {offsets = [4, 0], sizes = [1, 32], strides = [1, 1]} : vector<8x32xf32> to vector<1x32xf32>
    %106 = arith.addf %105, %10 : vector<1x32xf32>
    %107 = vector.broadcast %106 : vector<1x32xf32> to vector<8x32xf32>
    %108 = arith.addf %53, %107 : vector<8x32xf32>
    %cst_30 = arith.constant 0.000000e+00 : f32
    %109 = vector.broadcast %cst_30 : f32 to vector<8x32xf32>
    %110 = arith.maximumf %108, %109 : vector<8x32xf32>
    %cst_31 = arith.constant dense<0.000000e+00> : vector<8x128xf32>
    %111 = tpu.matmul %110, %5, %cst_31 {dimension_numbers = #tpu.dot_dimension_numbers<[1], [0], [0], [1], [0, 0, 1, 1], [], []>} : vector<8x32xf32>, vector<32x128xf32>, vector<8x128xf32> -> vector<8x128xf32>
    %c4_i32 = arith.constant 4 : i32
    %112 = vector.broadcast %c4_i32 : i32 to vector<8x128xi32>
    %113 = arith.cmpi eq, %55, %112 : vector<8x128xi32>
    %cst_32 = arith.constant 0.000000e+00 : f32
    %114 = vector.broadcast %cst_32 : f32 to vector<8x128xf32>
    %115 = arith.select %113, %111, %114 : vector<8x128xi1>, vector<8x128xf32>
    %116 = arith.addf %104, %115 : vector<8x128xf32>
    %c0_33 = arith.constant 0 : index
    %c0_34 = arith.constant 0 : index
    %117 = memref.load %arg2[%c0_33, %c0_34] : memref<1x1xf32, #tpu.memory_space<smem>>
    %118 = vector.broadcast %117 : f32 to vector<8x128xf32>
    %119 = arith.addf %116, %118 : vector<8x128xf32>
    %c0_35 = arith.constant 0 : index
    %c0_36 = arith.constant 0 : index
    %120 = vector.load %arg3[%c0_35, %c0_36] : memref<8x128xf32, #tpu.memory_space<vmem>>, vector<8x128xf32>
    tpu.vector_store %arg3[%c0_35, %c0_36], %119 {strides = array<i32>} : memref<8x128xf32, #tpu.memory_space<vmem>>, vector<8x128xf32>,
    return
  }
}

</mosaic_0001>

<llo_original>
// kernel: crnet_forward.1
$region0: #{crnet_forward.1}
  #allocation0 [shape = 'u32[]', space=smem, size = 0x4, offset = 0x4, fixed_abs, tag = 'smem constant byte address 0x4 - core index']
  #allocation1 [shape = 'u32[144,128]{1,0:T(1,128)}', space=vmem, size = 0x12000, scoped, tag = 'internal scratch']
  #allocation2 [shape = 'f32[1,1]{1,0:T(1,128)S(6)}', space=smem, size = 0x200, scoped, tag = 'scoped memory for crnet_forward.1']
  %s0 = inlined_call_operand.vmem [shape: f32[24,32], index: 0, kind: input, shape index: {}]
  %s1 = inlined_call_operand.hbm [shape: f32[328,128], index: 1, kind: input, shape index: {}]
  %s2 = inlined_call_operand.<no memory space> [shape: f32[1,1], index: 2, kind: input, shape index: {}]
  %s3 = inlined_call_operand.vmem [shape: f32[8,128], index: 3, kind: output, shape index: {}]
  %s4 = sld [smem:[#allocation0]]
  $region26: #{crnet_forward.1} parent=0
    _
  %s6 = ssub.s32 1, %s4
  %s7 = scalar_select 0, %s6, %s4
  %8 = sst [smem:[#allocation2]] %s2
  $region1: #{crnet_forward.1} parent=0
    #allocation3 [shape = 'u8[167936]{0}', space=vmem, size = 0x29000, scoped, tag = 'input window, operand 1, single buffered']
    #allocation4 [shape = 's32[1]{0}', space=sflag, size = 0x4, scoped, tag = 'scoped memory for crnet_forward.1']
    %9 = vsyncpa [#allocation4], 0
    // Predicated region
    $region2: #{crnet_forward.1} parent=1 // pred_check
      _
    $region3: #{crnet_forward.1} parent=1 // pred_check_branch
      %11 = sbr.rel (0) target = $region5
    $region4: #{crnet_forward.1} parent=1 // pred_region
      _
    $region5: #{crnet_forward.1} parent=1 // pred_fallthru
      _
    // Predicated region
    $region6: #{crnet_forward.1} parent=1 // pred_check
      _
    $region7: #{crnet_forward.1} parent=1 // pred_check_branch
      %13 = sbr.rel (0) target = $region9
    $region8: #{crnet_forward.1} parent=1 // pred_region
      %s15 = ssub.s32 5248, 5248
      %16 = vsyncadd [#allocation4], %s15
      %s17 = sshll.u32 [#allocation3], 4
      %s18 = int_to_ptr.vmem [resolvable:$true] %s17
      %23 = dma.hbm_to_vmem [thread:$0]  %s1, 5248, %s18, [#allocation4], 128, 128, 8
    $region9: #{crnet_forward.1} parent=1 // pred_fallthru
      _
    // Predicated region
    $region10: #{crnet_forward.1} parent=1 // pred_check
      _
    $region11: #{crnet_forward.1} parent=1 // pred_check_branch
      %25 = sbr.rel (0) target = $region13
    $region12: #{crnet_forward.1} parent=1 // pred_region
      _
    $region13: #{crnet_forward.1} parent=1 // pred_fallthru
      _
    // Predicated region
    $region14: #{crnet_forward.1} parent=1 // pred_check
      _
    $region15: #{crnet_forward.1} parent=1 // pred_check_branch
      %27 = sbr.rel (0) target = $region17
    $region16: #{crnet_forward.1} parent=1 // pred_region
      %28 = dma.done [#allocation4], 5248
    $region17: #{crnet_forward.1} parent=1 // pred_fallthru
      _
    %v29 = vld [vmem:[#allocation3] sm:$0xff]
    %v30 = vld [vmem:[#allocation3 + $0x8] sm:$0xff]
    %v31 = vld [vmem:[#allocation3 + $0x10] sm:$0xff]
    %v32 = vld [vmem:[#allocation3 + $0x18] sm:$0xff]
    %v33 = vld [vmem:[#allocation3 + $0x20] sm:$0xff]
    %v34 = vld [vmem:[#allocation3 + $0x28] sm:$0xff]
    %v35 = vld [vmem:[#allocation3 + $0x30] sm:$0xff]
    %v36 = vld [vmem:[#allocation3 + $0x38] sm:$0xff]
    %v37 = vld [vmem:[#allocation3 + $0x40] sm:$0xff]
    %v38 = vld [vmem:[#allocation3 + $0x48] sm:$0xff]
    %v39 = vld [vmem:[#allocation3 + $0x50] sm:$0xff]
    %v40 = vld [vmem:[#allocation3 + $0x58] sm:$0xff]
    %v41 = vld [vmem:[#allocation3 + $0x60] sm:$0xff]
    %v42 = vld [vmem:[#allocation3 + $0x68] sm:$0xff]
    %v43 = vld [vmem:[#allocation3 + $0x70] sm:$0xff]
    %v44 = vld [vmem:[#allocation3 + $0x78] sm:$0xff]
    %v45 = vld [vmem:[#allocation3 + $0x80] sm:$0xff]
    %v46 = vld [vmem:[#allocation3 + $0x88] sm:$0xff]
    %v47 = vld [vmem:[#allocation3 + $0x90] sm:$0xff]
    %v48 = vld [vmem:[#allocation3 + $0x98] sm:$0xff]
    %v49 = vld [vmem:[#allocation3 + $0xa0] sm:$0xff]
    %v50 = vld [vmem:[#allocation3 + $0xa8] sm:$0xff]
    %v51 = vld [vmem:[#allocation3 + $0xb0] sm:$0xff]
    %v52 = vld [vmem:[#allocation3 + $0xb8] sm:$0xff]
    %v53 = vld [vmem:[#allocation3 + $0xc0] sm:$0xff]
    %v54 = vld [vmem:[#allocation3 + $0xc8] sm:$0xff]
    %v55 = vld [vmem:[#allocation3 + $0xd0] sm:$0xff]
    %v56 = vld [vmem:[#allocation3 + $0xd8] sm:$0xff]
    %v57 = vld [vmem:[#allocation3 + $0xe0] sm:$0xff]
    %v58 = vld [vmem:[#allocation3 + $0xe8] sm:$0xff]
    %v59 = vld [vmem:[#allocation3 + $0xf0] sm:$0xff]
    %v60 = vld [vmem:[#allocation3 + $0xf8] sm:$0xff]
    %v61 = vld [vmem:[#allocation3 + $0x100] sm:$0xff]
    %v62 = vld [vmem:[#allocation3 + $0x108] sm:$0xff]
    %v63 = vld [vmem:[#allocation3 + $0x110] sm:$0xff]
    %v64 = vld [vmem:[#allocation3 + $0x118] sm:$0xff]
    %v65 = vld [vmem:[#allocation3 + $0x120] sm:$0xff]
    %v66 = vld [vmem:[#allocation3 + $0x128] sm:$0xff]
    %v67 = vld [vmem:[#allocation3 + $0x130] sm:$0xff]
    %v68 = vld [vmem:[#allocation3 + $0x138] sm:$0xff]
    %v69 = vld [vmem:[#allocation3 + $0x140] sm:$0xff]
    %v70 = vld [vmem:[%s0] sm:$0xff]
    %v71 = vld [vmem:[%s0 + $0x8] sm:$0xff]
    %v72 = vld [vmem:[%s0 + $0x10] sm:$0xff]
    %v73 = vlaneseq
    %v74 = vshrl.u32 %v73, 7
    %v75 = vsub.s32 0, %v74
    %v76 = vrot.slane %v69, %v75
    %vm77 = vcmask 261120
    %v79 = vsel %vm77, %v70, 0
    %v82 = vsel %vm77, %v71, 0
    %v85 = vsel %vm77, %v72, 0
    %87 = vmatprep.subr.mxu0 0.0
    %88 = vmatpush1.msra.mxu0 %v29
    %89 = vmatprep.subr.mxu0 0.0
    %90 = vmatpush1.msra.mxu0 %v30
    %91 = vmatprep.subr.mxu0 0.0
    %92 = vmatpush1.msra.mxu0 %v31
    %93 = vmatprep.subr.mxu0 0.0
    %94 = vmatpush1.msra.mxu0 %v32
    %95 = vmatprep.subr.mxu0 0.0
    %96 = vmatpush1.msra.mxu0 0.0
    %97 = vmatprep.subr.mxu0 0.0
    %98 = vmatpush1.msra.mxu0 0.0
    %99 = vmatprep.subr.mxu0 0.0
    %100 = vmatpush1.msra.mxu0 0.0
    %101 = vmatprep.subr.mxu0 0.0
    %102 = vmatpush1.msra.mxu0 0.0
    %103 = vmatprep.subr.mxu0 0.0
    %104 = vmatpush1.msra.mxu0 0.0
    %105 = vmatprep.subr.mxu0 0.0
    %106 = vmatpush1.msra.mxu0 0.0
    %107 = vmatprep.subr.mxu0 0.0
    %108 = vmatpush1.msra.mxu0 0.0
    %109 = vmatprep.subr.mxu0 0.0
    %110 = vmatpush1.msra.mxu0 0.0
    %111 = vmatprep.subr.mxu0 0.0
    %112 = vmatpush1.msra.mxu0 0.0
    %113 = vmatprep.subr.mxu0 0.0
    %114 = vmatpush1.msra.mxu0 0.0
    %115 = vmatprep.subr.mxu0 0.0
    %116 = vmatpush1.msra.mxu0 0.0
    %117 = vmatprep.subr.mxu0 0.0
    %118 = vmatpush1.msra.mxu0 0.0
    %119 = vmatprep.subr.mxu0 0.0
    %120 = vmatpush1.msra.mxu0 0.0
    %121 = vmatprep.subr.mxu0 0.0
    %122 = vmatpush1.msra.mxu0 0.0
    %123 = vmatprep.subr.mxu0 0.0
    %124 = vmatpush1.msra.mxu0 0.0
    %125 = vmatprep.subr.mxu0 0.0
    %126 = vmatpush1.msra.mxu0 0.0
    %127 = vmatprep.subr.mxu0 0.0
    %128 = vmatpush1.msra.mxu0 0.0
    %129 = vmatprep.subr.mxu0 0.0
    %130 = vmatpush1.msra.mxu0 0.0
    %131 = vmatprep.subr.mxu0 0.0
    %132 = vmatpush1.msra.mxu0 0.0
    %133 = vmatprep.subr.mxu0 0.0
    %134 = vmatpush1.msra.mxu0 0.0
    %135 = vmatprep.subr.mxu0 0.0
    %136 = vmatpush1.msra.mxu0 0.0
    %137 = vmatprep.subr.mxu0 0.0
    %138 = vmatpush1.msra.mxu0 0.0
    %139 = vmatprep.subr.mxu0 0.0
    %140 = vmatpush1.msra.mxu0 0.0
    %141 = vmatprep.subr.mxu0 0.0
    %142 = vmatpush1.msra.mxu0 0.0
    %143 = vmatprep.subr.mxu0 0.0
    %144 = vmatpush1.msra.mxu0 0.0
    %145 = vmatprep.subr.mxu0 0.0
    %146 = vmatpush1.msra.mxu0 0.0
    %147 = vmatprep.subr.mxu0 0.0
    %148 = vmatpush1.msra.mxu0 0.0
    %149 = vmatprep.subr.mxu0 0.0
    %150 = vmatpush1.msra.mxu0 0.0
    %151 = vmatprep.mubr.f32.mxu0 0.0
    %152 = vmatmul.mubr.f32.gmra.mrb[0].mxu0 %v79
    %v153 = vpop.f32.mrb[0].mxu0
    %v154 = vadd.f32 %v76, %v153
    %v155 = vpop.f32.mrb[0].mxu0
    %156 = vmatprep.mubr.f32.mxu0 0.0
    %157 = vmatmul.mubr.f32.gmra.mrb[0].mxu0 %v82
    %v158 = vpop.f32.mrb[0].mxu0
    %v159 = vadd.f32 %v76, %v158
    %v160 = vpop.f32.mrb[0].mxu0
    %161 = vmatprep.mubr.f32.mxu0 0.0
    %162 = vmatmul.mubr.f32.gmra.mrb[0].mxu0 %v85
    %v163 = vpop.f32.mrb[0].mxu0
    %v164 = vadd.f32 %v76, %v163
    %v165 = vpop.f32.mrb[0].mxu0
    %166 = vdwg.mxu0
    %v167 = vmax.f32 %v154, 0.0
    %v168 = vmax.f32 %v159, 0.0
    %v169 = vmax.f32 %v164, 0.0
    %v170 = vlaneseq
    %v171 = vshrl.u32 %v170, 7
    %v172 = vsub.s32 1, %v171
    %v173 = vrot.slane %v69, %v172
    %vm174 = vcmask 523264
    %v176 = vsel %vm174, %v167, 0
    %v179 = vsel %vm174, %v168, 0
    %v182 = vsel %vm174, %v169, 0
    %184 = vmatprep.subr.mxu0 0.0
    %185 = vmatpush1.msra.mxu0 %v33
    %186 = vmatprep.subr.mxu0 0.0
    %187 = vmatpush1.msra.mxu0 %v34
    %188 = vmatprep.subr.mxu0 0.0
    %189 = vmatpush1.msra.mxu0 %v35
    %190 = vmatprep.subr.mxu0 0.0
    %191 = vmatpush1.msra.mxu0 %v36
    %192 = vmatprep.subr.mxu0 0.0
    %193 = vmatpush1.msra.mxu0 %v37
    %194 = vmatprep.subr.mxu0 0.0
    %195 = vmatpush1.msra.mxu0 %v38
    %196 = vmatprep.subr.mxu0 0.0
    %197 = vmatpush1.msra.mxu0 %v39
    %198 = vmatprep.subr.mxu0 0.0
    %199 = vmatpush1.msra.mxu0 %v40
    %200 = vmatprep.subr.mxu0 0.0
    %201 = vmatpush1.msra.mxu0 0.0
    %202 = vmatprep.subr.mxu0 0.0
    %203 = vmatpush1.msra.mxu0 0.0
    %204 = vmatprep.subr.mxu0 0.0
    %205 = vmatpush1.msra.mxu0 0.0
    %206 = vmatprep.subr.mxu0 0.0
    %207 = vmatpush1.msra.mxu0 0.0
    %208 = vmatprep.subr.mxu0 0.0
    %209 = vmatpush1.msra.mxu0 0.0
    %210 = vmatprep.subr.mxu0 0.0
    %211 = vmatpush1.msra.mxu0 0.0
    %212 = vmatprep.subr.mxu0 0.0
    %213 = vmatpush1.msra.mxu0 0.0
    %214 = vmatprep.subr.mxu0 0.0
    %215 = vmatpush1.msra.mxu0 0.0
    %216 = vmatprep.subr.mxu0 0.0
    %217 = vmatpush1.msra.mxu0 0.0
    %218 = vmatprep.subr.mxu0 0.0
    %219 = vmatpush1.msra.mxu0 0.0
    %220 = vmatprep.subr.mxu0 0.0
    %221 = vmatpush1.msra.mxu0 0.0
    %222 = vmatprep.subr.mxu0 0.0
    %223 = vmatpush1.msra.mxu0 0.0
    %224 = vmatprep.subr.mxu0 0.0
    %225 = vmatpush1.msra.mxu0 0.0
    %226 = vmatprep.subr.mxu0 0.0
    %227 = vmatpush1.msra.mxu0 0.0
    %228 = vmatprep.subr.mxu0 0.0
    %229 = vmatpush1.msra.mxu0 0.0
    %230 = vmatprep.subr.mxu0 0.0
    %231 = vmatpush1.msra.mxu0 0.0
    %232 = vmatprep.subr.mxu0 0.0
    %233 = vmatpush1.msra.mxu0 0.0
    %234 = vmatprep.subr.mxu0 0.0
    %235 = vmatpush1.msra.mxu0 0.0
    %236 = vmatprep.subr.mxu0 0.0
    %237 = vmatpush1.msra.mxu0 0.0
    %238 = vmatprep.subr.mxu0 0.0
    %239 = vmatpush1.msra.mxu0 0.0
    %240 = vmatprep.subr.mxu0 0.0
    %241 = vmatpush1.msra.mxu0 0.0
    %242 = vmatprep.subr.mxu0 0.0
    %243 = vmatpush1.msra.mxu0 0.0
    %244 = vmatprep.subr.mxu0 0.0
    %245 = vmatpush1.msra.mxu0 0.0
    %246 = vmatprep.subr.mxu0 0.0
    %247 = vmatpush1.msra.mxu0 0.0
    %248 = vmatprep.mubr.f32.mxu0 0.0
    %249 = vmatmul.mubr.f32.gmra.mrb[0].mxu0 %v176
    %v250 = vpop.f32.mrb[0].mxu0
    %v251 = vadd.f32 %v173, %v250
    %v252 = vpop.f32.mrb[0].mxu0
    %253 = vmatprep.mubr.f32.mxu0 0.0
    %254 = vmatmul.mubr.f32.gmra.mrb[0].mxu0 %v179
    %v255 = vpop.f32.mrb[0].mxu0
    %v256 = vadd.f32 %v173, %v255
    %v257 = vpop.f32.mrb[0].mxu0
    %258 = vmatprep.mubr.f32.mxu0 0.0
    %259 = vmatmul.mubr.f32.gmra.mrb[0].mxu0 %v182
    %v260 = vpop.f32.mrb[0].mxu0
    %v261 = vadd.f32 %v173, %v260
    %v262 = vpop.f32.mrb[0].mxu0
    %263 = vdwg.mxu0
    %265 = vrot.lane.b32.xlu0 %v256, 32
    %v266 = vpop.permute.xlu0 %265
    %268 = vrot.lane.b32.xlu0 %v261, 96
    %v269 = vpop.permute.xlu0 %268
    %270 = vrot.lane.b32.xlu0 %v266, 96
    %v271 = vpop.permute.xlu0 %270
    %v272 = vsel %vm77, %v269, 0
    %v274 = vsel %vm77, %v271, 0
    %276 = vmatprep.subr.mxu0 0.0
    %277 = vmatpush1.msra.mxu0 %v41
    %278 = vmatprep.subr.mxu0 0.0
    %279 = vmatpush1.msra.mxu0 %v42
    %280 = vmatprep.subr.mxu0 0.0
    %281 = vmatpush1.msra.mxu0 %v43
    %282 = vmatprep.subr.mxu0 0.0
    %283 = vmatpush1.msra.mxu0 %v44
    %284 = vmatprep.subr.mxu0 0.0
    %285 = vmatpush1.msra.mxu0 0.0
    %286 = vmatprep.subr.mxu0 0.0
    %287 = vmatpush1.msra.mxu0 0.0
    %288 = vmatprep.subr.mxu0 0.0
    %289 = vmatpush1.msra.mxu0 0.0
    %290 = vmatprep.subr.mxu0 0.0
    %291 = vmatpush1.msra.mxu0 0.0
    %292 = vmatprep.subr.mxu0 0.0
    %293 = vmatpush1.msra.mxu0 0.0
    %294 = vmatprep.subr.mxu0 0.0
    %295 = vmatpush1.msra.mxu0 0.0
    %296 = vmatprep.subr.mxu0 0.0
    %297 = vmatpush1.msra.mxu0 0.0
    %298 = vmatprep.subr.mxu0 0.0
    %299 = vmatpush1.msra.mxu0 0.0
    %300 = vmatprep.subr.mxu0 0.0
    %301 = vmatpush1.msra.mxu0 0.0
    %302 = vmatprep.subr.mxu0 0.0
    %303 = vmatpush1.msra.mxu0 0.0
    %304 = vmatprep.subr.mxu0 0.0
    %305 = vmatpush1.msra.mxu0 0.0
    %306 = vmatprep.subr.mxu0 0.0
    %307 = vmatpush1.msra.mxu0 0.0
    %308 = vmatprep.subr.mxu0 0.0
    %309 = vmatpush1.msra.mxu0 0.0
    %310 = vmatprep.subr.mxu0 0.0
    %311 = vmatpush1.msra.mxu0 0.0
    %312 = vmatprep.subr.mxu0 0.0
    %313 = vmatpush1.msra.mxu0 0.0
    %314 = vmatprep.subr.mxu0 0.0
    %315 = vmatpush1.msra.mxu0 0.0
    %316 = vmatprep.subr.mxu0 0.0
    %317 = vmatpush1.msra.mxu0 0.0
    %318 = vmatprep.subr.mxu0 0.0
    %319 = vmatpush1.msra.mxu0 0.0
    %320 = vmatprep.subr.mxu0 0.0
    %321 = vmatpush1.msra.mxu0 0.0
    %322 = vmatprep.subr.mxu0 0.0
    %323 = vmatpush1.msra.mxu0 0.0
    %324 = vmatprep.subr.mxu0 0.0
    %325 = vmatpush1.msra.mxu0 0.0
    %326 = vmatprep.subr.mxu0 0.0
    %327 = vmatpush1.msra.mxu0 0.0
    %328 = vmatprep.subr.mxu0 0.0
    %329 = vmatpush1.msra.mxu0 0.0
    %330 = vmatprep.subr.mxu0 0.0
    %331 = vmatpush1.msra.mxu0 0.0
    %332 = vmatprep.subr.mxu0 0.0
    %333 = vmatpush1.msra.mxu0 0.0
    %334 = vmatprep.subr.mxu0 0.0
    %335 = vmatpush1.msra.mxu0 0.0
    %336 = vmatprep.subr.mxu0 0.0
    %337 = vmatpush1.msra.mxu0 0.0
    %338 = vmatprep.subr.mxu0 0.0
    %339 = vmatpush1.msra.mxu0 0.0
    %340 = vmatprep.mubr.f32.mxu0 0.0
    %341 = vmatmul.mubr.f32.gmra.mrb[0].mxu0 %v272
    %v342 = vpop.f32.mrb[0].mxu0
    %v343 = vadd.f32 0.0, %v342
    %v344 = vpop.f32.mrb[0].mxu0
    %345 = vmatprep.mubr.f32.mxu0 0.0
    %346 = vmatmul.mubr.f32.gmra.mrb[0].mxu0 %v274
    %v347 = vpop.f32.mrb[0].mxu0
    %v348 = vadd.f32 0.0, %v347
    %v349 = vpop.f32.mrb[0].mxu0
    %350 = vdwg.mxu0
    %v351 = vlaneseq
    %v352 = vshrl.u32 %v351, 7
    %v353 = vsub.s32 0, %v352
    %v354 = vrot.slane %v348, %v353
    %v355 = vsub.f32 %v343, %v354
    %v356 = vlaneseq
    %v357 = vshrl.u32 %v356, 7
    %v358 = vsub.s32 2, %v357
    %v359 = vrot.slane %v69, %v358
    %v360 = vadd.f32 %v355, %v359
    %v361 = vmax.f32 %v360, 0.0
    %v362 = vlaneseq
    %v363 = vshrl.u32 %v362, 7
    %v364 = vsub.s32 1, %v363
    %v365 = vrot.slane %v348, %v364
    %v366 = vsub.f32 %v343, %v365
    %v367 = vadd.f32 %v366, %v359
    %v368 = vmax.f32 %v367, 0.0
    %v369 = vadd.f32 %v361, %v368
    %v370 = vlaneseq
    %v371 = vshrl.u32 %v370, 7
    %v372 = vsub.s32 2, %v371
    %v373 = vrot.slane %v348, %v372
    %v374 = vsub.f32 %v343, %v373
    %v375 = vadd.f32 %v374, %v359
    %v376 = vmax.f32 %v375, 0.0
    %v377 = vadd.f32 %v369, %v376
    %v379 = vsel %vm77, %v251, 0
    %381 = vmatprep.subr.mxu0 0.0
    %382 = vmatpush1.msra.mxu0 %v45
    %383 = vmatprep.subr.mxu0 0.0
    %384 = vmatpush1.msra.mxu0 %v46
    %385 = vmatprep.subr.mxu0 0.0
    %386 = vmatpush1.msra.mxu0 %v47
    %387 = vmatprep.subr.mxu0 0.0
    %388 = vmatpush1.msra.mxu0 %v48
    %389 = vmatprep.subr.mxu0 0.0
    %390 = vmatpush1.msra.mxu0 0.0
    %391 = vmatprep.subr.mxu0 0.0
    %392 = vmatpush1.msra.mxu0 0.0
    %393 = vmatprep.subr.mxu0 0.0
    %394 = vmatpush1.msra.mxu0 0.0
    %395 = vmatprep.subr.mxu0 0.0
    %396 = vmatpush1.msra.mxu0 0.0
    %397 = vmatprep.subr.mxu0 0.0
    %398 = vmatpush1.msra.mxu0 0.0
    %399 = vmatprep.subr.mxu0 0.0
    %400 = vmatpush1.msra.mxu0 0.0
    %401 = vmatprep.subr.mxu0 0.0
    %402 = vmatpush1.msra.mxu0 0.0
    %403 = vmatprep.subr.mxu0 0.0
    %404 = vmatpush1.msra.mxu0 0.0
    %405 = vmatprep.subr.mxu0 0.0
    %406 = vmatpush1.msra.mxu0 0.0
    %407 = vmatprep.subr.mxu0 0.0
    %408 = vmatpush1.msra.mxu0 0.0
    %409 = vmatprep.subr.mxu0 0.0
    %410 = vmatpush1.msra.mxu0 0.0
    %411 = vmatprep.subr.mxu0 0.0
    %412 = vmatpush1.msra.mxu0 0.0
    %413 = vmatprep.subr.mxu0 0.0
    %414 = vmatpush1.msra.mxu0 0.0
    %415 = vmatprep.subr.mxu0 0.0
    %416 = vmatpush1.msra.mxu0 0.0
    %417 = vmatprep.subr.mxu0 0.0
    %418 = vmatpush1.msra.mxu0 0.0
    %419 = vmatprep.subr.mxu0 0.0
    %420 = vmatpush1.msra.mxu0 0.0
    %421 = vmatprep.subr.mxu0 0.0
    %422 = vmatpush1.msra.mxu0 0.0
    %423 = vmatprep.subr.mxu0 0.0
    %424 = vmatpush1.msra.mxu0 0.0
    %425 = vmatprep.subr.mxu0 0.0
    %426 = vmatpush1.msra.mxu0 0.0
    %427 = vmatprep.subr.mxu0 0.0
    %428 = vmatpush1.msra.mxu0 0.0
    %429 = vmatprep.subr.mxu0 0.0
    %430 = vmatpush1.msra.mxu0 0.0
    %431 = vmatprep.subr.mxu0 0.0
    %432 = vmatpush1.msra.mxu0 0.0
    %433 = vmatprep.subr.mxu0 0.0
    %434 = vmatpush1.msra.mxu0 0.0
    %435 = vmatprep.subr.mxu0 0.0
    %436 = vmatpush1.msra.mxu0 0.0
    %437 = vmatprep.subr.mxu0 0.0
    %438 = vmatpush1.msra.mxu0 0.0
    %439 = vmatprep.subr.mxu0 0.0
    %440 = vmatpush1.msra.mxu0 0.0
    %441 = vmatprep.subr.mxu0 0.0
    %442 = vmatpush1.msra.mxu0 0.0
    %443 = vmatprep.subr.mxu0 0.0
    %444 = vmatpush1.msra.mxu0 0.0
    %445 = vmatprep.mubr.f32.mxu0 0.0
    %446 = vmatmul.mubr.f32.gmra.mrb[0].mxu0 %v379
    %v447 = vpop.f32.mrb[0].mxu0
    %v448 = vadd.f32 0.0, %v447
    %v449 = vpop.f32.mrb[0].mxu0
    %450 = vdwg.mxu0
    %451 = vmatprep.subr.mxu0 0.0
    %452 = vmatpush1.msra.mxu0 %v49
    %453 = vmatprep.subr.mxu0 0.0
    %454 = vmatpush1.msra.mxu0 %v50
    %455 = vmatprep.subr.mxu0 0.0
    %456 = vmatpush1.msra.mxu0 %v51
    %457 = vmatprep.subr.mxu0 0.0
    %458 = vmatpush1.msra.mxu0 %v52
    %459 = vmatprep.subr.mxu0 0.0
    %460 = vmatpush1.msra.mxu0 %v53
    %461 = vmatprep.subr.mxu0 0.0
    %462 = vmatpush1.msra.mxu0 %v54
    %463 = vmatprep.subr.mxu0 0.0
    %464 = vmatpush1.msra.mxu0 %v55
    %465 = vmatprep.subr.mxu0 0.0
    %466 = vmatpush1.msra.mxu0 %v56
    %467 = vmatprep.subr.mxu0 0.0
    %468 = vmatpush1.msra.mxu0 %v57
    %469 = vmatprep.subr.mxu0 0.0
    %470 = vmatpush1.msra.mxu0 %v58
    %471 = vmatprep.subr.mxu0 0.0
    %472 = vmatpush1.msra.mxu0 %v59
    %473 = vmatprep.subr.mxu0 0.0
    %474 = vmatpush1.msra.mxu0 %v60
    %475 = vmatprep.subr.mxu0 0.0
    %476 = vmatpush1.msra.mxu0 %v61
    %477 = vmatprep.subr.mxu0 0.0
    %478 = vmatpush1.msra.mxu0 %v62
    %479 = vmatprep.subr.mxu0 0.0
    %480 = vmatpush1.msra.mxu0 %v63
    %481 = vmatprep.subr.mxu0 0.0
    %482 = vmatpush1.msra.mxu0 %v64
    %483 = vmatprep.subr.mxu0 0.0
    %484 = vmatpush1.msra.mxu0 0.0
    %485 = vmatprep.subr.mxu0 0.0
    %486 = vmatpush1.msra.mxu0 0.0
    %487 = vmatprep.subr.mxu0 0.0
    %488 = vmatpush1.msra.mxu0 0.0
    %489 = vmatprep.subr.mxu0 0.0
    %490 = vmatpush1.msra.mxu0 0.0
    %491 = vmatprep.subr.mxu0 0.0
    %492 = vmatpush1.msra.mxu0 0.0
    %493 = vmatprep.subr.mxu0 0.0
    %494 = vmatpush1.msra.mxu0 0.0
    %495 = vmatprep.subr.mxu0 0.0
    %496 = vmatpush1.msra.mxu0 0.0
    %497 = vmatprep.subr.mxu0 0.0
    %498 = vmatpush1.msra.mxu0 0.0
    %499 = vmatprep.subr.mxu0 0.0
    %500 = vmatpush1.msra.mxu0 0.0
    %501 = vmatprep.subr.mxu0 0.0
    %502 = vmatpush1.msra.mxu0 0.0
    %503 = vmatprep.subr.mxu0 0.0
    %504 = vmatpush1.msra.mxu0 0.0
    %505 = vmatprep.subr.mxu0 0.0
    %506 = vmatpush1.msra.mxu0 0.0
    %507 = vmatprep.subr.mxu0 0.0
    %508 = vmatpush1.msra.mxu0 0.0
    %509 = vmatprep.subr.mxu0 0.0
    %510 = vmatpush1.msra.mxu0 0.0
    %511 = vmatprep.subr.mxu0 0.0
    %512 = vmatpush1.msra.mxu0 0.0
    %513 = vmatprep.subr.mxu0 0.0
    %514 = vmatpush1.msra.mxu0 0.0
    %515 = vmatprep.mubr.f32.mxu0 0.0
    %516 = vmatmul.mubr.f32.gmra.mrb[0].mxu0 %v377
    %v517 = vpop.f32.mrb[0].mxu0
    %v518 = vadd.f32 0.0, %v517
    %v519 = vpop.f32.mrb[0].mxu0
    %520 = vdwg.mxu0
    %v521 = vlaneseq
    %v522 = vand.u32 %v521, 127
    %v524 = vrot.slane %v69, 3
    %v526 = vadd.f32 %v518, %v524
    %v527 = vlaneseq
    %v528 = vshrl.u32 %v527, 7
    %v529 = vsub.s32 0, %v528
    %v530 = vrot.slane %v526, %v529
    %v531 = vadd.f32 %v448, %v530
    %v532 = vmax.f32 %v531, 0.0
    %v534 = vsel %vm77, %v532, 0
    %536 = vmatprep.subr.mxu0 0.0
    %537 = vmatpush1.msra.mxu0 %v65
    %538 = vmatprep.subr.mxu0 0.0
    %539 = vmatpush1.msra.mxu0 %v66
    %540 = vmatprep.subr.mxu0 0.0
    %541 = vmatpush1.msra.mxu0 %v67
    %542 = vmatprep.subr.mxu0 0.0
    %543 = vmatpush1.msra.mxu0 %v68
    %544 = vmatprep.subr.mxu0 0.0
    %545 = vmatpush1.msra.mxu0 0.0
    %546 = vmatprep.subr.mxu0 0.0
    %547 = vmatpush1.msra.mxu0 0.0
    %548 = vmatprep.subr.mxu0 0.0
    %549 = vmatpush1.msra.mxu0 0.0
    %550 = vmatprep.subr.mxu0 0.0
    %551 = vmatpush1.msra.mxu0 0.0
    %552 = vmatprep.subr.mxu0 0.0
    %553 = vmatpush1.msra.mxu0 0.0
    %554 = vmatprep.subr.mxu0 0.0
    %555 = vmatpush1.msra.mxu0 0.0
    %556 = vmatprep.subr.mxu0 0.0
    %557 = vmatpush1.msra.mxu0 0.0
    %558 = vmatprep.subr.mxu0 0.0
    %559 = vmatpush1.msra.mxu0 0.0
    %560 = vmatprep.subr.mxu0 0.0
    %561 = vmatpush1.msra.mxu0 0.0
    %562 = vmatprep.subr.mxu0 0.0
    %563 = vmatpush1.msra.mxu0 0.0
    %564 = vmatprep.subr.mxu0 0.0
    %565 = vmatpush1.msra.mxu0 0.0
    %566 = vmatprep.subr.mxu0 0.0
    %567 = vmatpush1.msra.mxu0 0.0
    %568 = vmatprep.subr.mxu0 0.0
    %569 = vmatpush1.msra.mxu0 0.0
    %570 = vmatprep.subr.mxu0 0.0
    %571 = vmatpush1.msra.mxu0 0.0
    %572 = vmatprep.subr.mxu0 0.0
    %573 = vmatpush1.msra.mxu0 0.0
    %574 = vmatprep.subr.mxu0 0.0
    %575 = vmatpush1.msra.mxu0 0.0
    %576 = vmatprep.subr.mxu0 0.0
    %577 = vmatpush1.msra.mxu0 0.0
    %578 = vmatprep.subr.mxu0 0.0
    %579 = vmatpush1.msra.mxu0 0.0
    %580 = vmatprep.subr.mxu0 0.0
    %581 = vmatpush1.msra.mxu0 0.0
    %582 = vmatprep.subr.mxu0 0.0
    %583 = vmatpush1.msra.mxu0 0.0
    %584 = vmatprep.subr.mxu0 0.0
    %585 = vmatpush1.msra.mxu0 0.0
    %586 = vmatprep.subr.mxu0 0.0
    %587 = vmatpush1.msra.mxu0 0.0
    %588 = vmatprep.subr.mxu0 0.0
    %589 = vmatpush1.msra.mxu0 0.0
    %590 = vmatprep.subr.mxu0 0.0
    %591 = vmatpush1.msra.mxu0 0.0
    %592 = vmatprep.subr.mxu0 0.0
    %593 = vmatpush1.msra.mxu0 0.0
    %594 = vmatprep.subr.mxu0 0.0
    %595 = vmatpush1.msra.mxu0 0.0
    %596 = vmatprep.subr.mxu0 0.0
    %597 = vmatpush1.msra.mxu0 0.0
    %598 = vmatprep.subr.mxu0 0.0
    %599 = vmatpush1.msra.mxu0 0.0
    %600 = vmatprep.mubr.f32.mxu0 0.0
    %601 = vmatmul.mubr.f32.gmra.mrb[0].mxu0 %v534
    %v602 = vpop.f32.mrb[0].mxu0
    %v603 = vadd.f32 0.0, %v602
    %v604 = vpop.f32.mrb[0].mxu0
    %605 = vdwg.mxu0
    %vm606 = vcmp.eq.s32.totalorder %v522, 0
    %v607 = vsel %vm606, %v603, 0.0
    %v608 = vadd.f32 %v607, 0.0
    %v609 = vrot.slane %v69, 2
    %v611 = vadd.f32 %v518, %v609
    %v612 = vlaneseq
    %v613 = vshrl.u32 %v612, 7
    %v614 = vsub.s32 1, %v613
    %v615 = vrot.slane %v611, %v614
    %v616 = vadd.f32 %v448, %v615
    %v617 = vmax.f32 %v616, 0.0
    %v619 = vsel %vm77, %v617, 0
    %621 = vmatprep.subr.mxu0 0.0
    %622 = vmatpush1.msra.mxu0 %v65
    %623 = vmatprep.subr.mxu0 0.0
    %624 = vmatpush1.msra.mxu0 %v66
    %625 = vmatprep.subr.mxu0 0.0
    %626 = vmatpush1.msra.mxu0 %v67
    %627 = vmatprep.subr.mxu0 0.0
    %628 = vmatpush1.msra.mxu0 %v68
    %629 = vmatprep.subr.mxu0 0.0
    %630 = vmatpush1.msra.mxu0 0.0
    %631 = vmatprep.subr.mxu0 0.0
    %632 = vmatpush1.msra.mxu0 0.0
    %633 = vmatprep.subr.mxu0 0.0
    %634 = vmatpush1.msra.mxu0 0.0
    %635 = vmatprep.subr.mxu0 0.0
    %636 = vmatpush1.msra.mxu0 0.0
    %637 = vmatprep.subr.mxu0 0.0
    %638 = vmatpush1.msra.mxu0 0.0
    %639 = vmatprep.subr.mxu0 0.0
    %640 = vmatpush1.msra.mxu0 0.0
    %641 = vmatprep.subr.mxu0 0.0
    %642 = vmatpush1.msra.mxu0 0.0
    %643 = vmatprep.subr.mxu0 0.0
    %644 = vmatpush1.msra.mxu0 0.0
    %645 = vmatprep.subr.mxu0 0.0
    %646 = vmatpush1.msra.mxu0 0.0
    %647 = vmatprep.subr.mxu0 0.0
    %648 = vmatpush1.msra.mxu0 0.0
    %649 = vmatprep.subr.mxu0 0.0
    %650 = vmatpush1.msra.mxu0 0.0
    %651 = vmatprep.subr.mxu0 0.0
    %652 = vmatpush1.msra.mxu0 0.0
    %653 = vmatprep.subr.mxu0 0.0
    %654 = vmatpush1.msra.mxu0 0.0
    %655 = vmatprep.subr.mxu0 0.0
    %656 = vmatpush1.msra.mxu0 0.0
    %657 = vmatprep.subr.mxu0 0.0
    %658 = vmatpush1.msra.mxu0 0.0
    %659 = vmatprep.subr.mxu0 0.0
    %660 = vmatpush1.msra.mxu0 0.0
    %661 = vmatprep.subr.mxu0 0.0
    %662 = vmatpush1.msra.mxu0 0.0
    %663 = vmatprep.subr.mxu0 0.0
    %664 = vmatpush1.msra.mxu0 0.0
    %665 = vmatprep.subr.mxu0 0.0
    %666 = vmatpush1.msra.mxu0 0.0
    %667 = vmatprep.subr.mxu0 0.0
    %668 = vmatpush1.msra.mxu0 0.0
    %669 = vmatprep.subr.mxu0 0.0
    %670 = vmatpush1.msra.mxu0 0.0
    %671 = vmatprep.subr.mxu0 0.0
    %672 = vmatpush1.msra.mxu0 0.0
    %673 = vmatprep.subr.mxu0 0.0
    %674 = vmatpush1.msra.mxu0 0.0
    %675 = vmatprep.subr.mxu0 0.0
    %676 = vmatpush1.msra.mxu0 0.0
    %677 = vmatprep.subr.mxu0 0.0
    %678 = vmatpush1.msra.mxu0 0.0
    %679 = vmatprep.subr.mxu0 0.0
    %680 = vmatpush1.msra.mxu0 0.0
    %681 = vmatprep.subr.mxu0 0.0
    %682 = vmatpush1.msra.mxu0 0.0
    %683 = vmatprep.subr.mxu0 0.0
    %684 = vmatpush1.msra.mxu0 0.0
    %685 = vmatprep.mubr.f32.mxu0 0.0
    %686 = vmatmul.mubr.f32.gmra.mrb[0].mxu0 %v619
    %v687 = vpop.f32.mrb[0].mxu0
    %v688 = vadd.f32 0.0, %v687
    %v689 = vpop.f32.mrb[0].mxu0
    %690 = vdwg.mxu0
    %vm691 = vcmp.eq.s32.totalorder %v522, 1
    %v692 = vsel %vm691, %v688, 0.0
    %v693 = vadd.f32 %v608, %v692
    %v694 = vrot.slane %v69, 1
    %v696 = vadd.f32 %v518, %v694
    %v697 = vlaneseq
    %v698 = vshrl.u32 %v697, 7
    %v699 = vsub.s32 2, %v698
    %v700 = vrot.slane %v696, %v699
    %v701 = vadd.f32 %v448, %v700
    %v702 = vmax.f32 %v701, 0.0
    %v704 = vsel %vm77, %v702, 0
    %706 = vmatprep.subr.mxu0 0.0
    %707 = vmatpush1.msra.mxu0 %v65
    %708 = vmatprep.subr.mxu0 0.0
    %709 = vmatpush1.msra.mxu0 %v66
    %710 = vmatprep.subr.mxu0 0.0
    %711 = vmatpush1.msra.mxu0 %v67
    %712 = vmatprep.subr.mxu0 0.0
    %713 = vmatpush1.msra.mxu0 %v68
    %714 = vmatprep.subr.mxu0 0.0
    %715 = vmatpush1.msra.mxu0 0.0
    %716 = vmatprep.subr.mxu0 0.0
    %717 = vmatpush1.msra.mxu0 0.0
    %718 = vmatprep.subr.mxu0 0.0
    %719 = vmatpush1.msra.mxu0 0.0
    %720 = vmatprep.subr.mxu0 0.0
    %721 = vmatpush1.msra.mxu0 0.0
    %722 = vmatprep.subr.mxu0 0.0
    %723 = vmatpush1.msra.mxu0 0.0
    %724 = vmatprep.subr.mxu0 0.0
    %725 = vmatpush1.msra.mxu0 0.0
    %726 = vmatprep.subr.mxu0 0.0
    %727 = vmatpush1.msra.mxu0 0.0
    %728 = vmatprep.subr.mxu0 0.0
    %729 = vmatpush1.msra.mxu0 0.0
    %730 = vmatprep.subr.mxu0 0.0
    %731 = vmatpush1.msra.mxu0 0.0
    %732 = vmatprep.subr.mxu0 0.0
    %733 = vmatpush1.msra.mxu0 0.0
    %734 = vmatprep.subr.mxu0 0.0
    %735 = vmatpush1.msra.mxu0 0.0
    %736 = vmatprep.subr.mxu0 0.0
    %737 = vmatpush1.msra.mxu0 0.0
    %738 = vmatprep.subr.mxu0 0.0
    %739 = vmatpush1.msra.mxu0 0.0
    %740 = vmatprep.subr.mxu0 0.0
    %741 = vmatpush1.msra.mxu0 0.0
    %742 = vmatprep.subr.mxu0 0.0
    %743 = vmatpush1.msra.mxu0 0.0
    %744 = vmatprep.subr.mxu0 0.0
    %745 = vmatpush1.msra.mxu0 0.0
    %746 = vmatprep.subr.mxu0 0.0
    %747 = vmatpush1.msra.mxu0 0.0
    %748 = vmatprep.subr.mxu0 0.0
    %749 = vmatpush1.msra.mxu0 0.0
    %750 = vmatprep.subr.mxu0 0.0
    %751 = vmatpush1.msra.mxu0 0.0
    %752 = vmatprep.subr.mxu0 0.0
    %753 = vmatpush1.msra.mxu0 0.0
    %754 = vmatprep.subr.mxu0 0.0
    %755 = vmatpush1.msra.mxu0 0.0
    %756 = vmatprep.subr.mxu0 0.0
    %757 = vmatpush1.msra.mxu0 0.0
    %758 = vmatprep.subr.mxu0 0.0
    %759 = vmatpush1.msra.mxu0 0.0
    %760 = vmatprep.subr.mxu0 0.0
    %761 = vmatpush1.msra.mxu0 0.0
    %762 = vmatprep.subr.mxu0 0.0
    %763 = vmatpush1.msra.mxu0 0.0
    %764 = vmatprep.subr.mxu0 0.0
    %765 = vmatpush1.msra.mxu0 0.0
    %766 = vmatprep.subr.mxu0 0.0
    %767 = vmatpush1.msra.mxu0 0.0
    %768 = vmatprep.subr.mxu0 0.0
    %769 = vmatpush1.msra.mxu0 0.0
    %770 = vmatprep.mubr.f32.mxu0 0.0
    %771 = vmatmul.mubr.f32.gmra.mrb[0].mxu0 %v704
    %v772 = vpop.f32.mrb[0].mxu0
    %v773 = vadd.f32 0.0, %v772
    %v774 = vpop.f32.mrb[0].mxu0
    %775 = vdwg.mxu0
    %vm776 = vcmp.eq.s32.totalorder %v522, 2
    %v777 = vsel %vm776, %v773, 0.0
    %v778 = vadd.f32 %v693, %v777
    %v779 = vadd.f32 %v518, %v69
    %v780 = vlaneseq
    %v781 = vshrl.u32 %v780, 7
    %v782 = vsub.s32 3, %v781
    %v783 = vrot.slane %v779, %v782
    %v784 = vadd.f32 %v448, %v783
    %v785 = vmax.f32 %v784, 0.0
    %v787 = vsel %vm77, %v785, 0
    %789 = vmatprep.subr.mxu0 0.0
    %790 = vmatpush1.msra.mxu0 %v65
    %791 = vmatprep.subr.mxu0 0.0
    %792 = vmatpush1.msra.mxu0 %v66
    %793 = vmatprep.subr.mxu0 0.0
    %794 = vmatpush1.msra.mxu0 %v67
    %795 = vmatprep.subr.mxu0 0.0
    %796 = vmatpush1.msra.mxu0 %v68
    %797 = vmatprep.subr.mxu0 0.0
    %798 = vmatpush1.msra.mxu0 0.0
    %799 = vmatprep.subr.mxu0 0.0
    %800 = vmatpush1.msra.mxu0 0.0
    %801 = vmatprep.subr.mxu0 0.0
    %802 = vmatpush1.msra.mxu0 0.0
    %803 = vmatprep.subr.mxu0 0.0
    %804 = vmatpush1.msra.mxu0 0.0
    %805 = vmatprep.subr.mxu0 0.0
    %806 = vmatpush1.msra.mxu0 0.0
    %807 = vmatprep.subr.mxu0 0.0
    %808 = vmatpush1.msra.mxu0 0.0
    %809 = vmatprep.subr.mxu0 0.0
    %810 = vmatpush1.msra.mxu0 0.0
    %811 = vmatprep.subr.mxu0 0.0
    %812 = vmatpush1.msra.mxu0 0.0
    %813 = vmatprep.subr.mxu0 0.0
    %814 = vmatpush1.msra.mxu0 0.0
    %815 = vmatprep.subr.mxu0 0.0
    %816 = vmatpush1.msra.mxu0 0.0
    %817 = vmatprep.subr.mxu0 0.0
    %818 = vmatpush1.msra.mxu0 0.0
    %819 = vmatprep.subr.mxu0 0.0
    %820 = vmatpush1.msra.mxu0 0.0
    %821 = vmatprep.subr.mxu0 0.0
    %822 = vmatpush1.msra.mxu0 0.0
    %823 = vmatprep.subr.mxu0 0.0
    %824 = vmatpush1.msra.mxu0 0.0
    %825 = vmatprep.subr.mxu0 0.0
    %826 = vmatpush1.msra.mxu0 0.0
    %827 = vmatprep.subr.mxu0 0.0
    %828 = vmatpush1.msra.mxu0 0.0
    %829 = vmatprep.subr.mxu0 0.0
    %830 = vmatpush1.msra.mxu0 0.0
    %831 = vmatprep.subr.mxu0 0.0
    %832 = vmatpush1.msra.mxu0 0.0
    %833 = vmatprep.subr.mxu0 0.0
    %834 = vmatpush1.msra.mxu0 0.0
    %835 = vmatprep.subr.mxu0 0.0
    %836 = vmatpush1.msra.mxu0 0.0
    %837 = vmatprep.subr.mxu0 0.0
    %838 = vmatpush1.msra.mxu0 0.0
    %839 = vmatprep.subr.mxu0 0.0
    %840 = vmatpush1.msra.mxu0 0.0
    %841 = vmatprep.subr.mxu0 0.0
    %842 = vmatpush1.msra.mxu0 0.0
    %843 = vmatprep.subr.mxu0 0.0
    %844 = vmatpush1.msra.mxu0 0.0
    %845 = vmatprep.subr.mxu0 0.0
    %846 = vmatpush1.msra.mxu0 0.0
    %847 = vmatprep.subr.mxu0 0.0
    %848 = vmatpush1.msra.mxu0 0.0
    %849 = vmatprep.subr.mxu0 0.0
    %850 = vmatpush1.msra.mxu0 0.0
    %851 = vmatprep.subr.mxu0 0.0
    %852 = vmatpush1.msra.mxu0 0.0
    %853 = vmatprep.mubr.f32.mxu0 0.0
    %854 = vmatmul.mubr.f32.gmra.mrb[0].mxu0 %v787
    %v855 = vpop.f32.mrb[0].mxu0
    %v856 = vadd.f32 0.0, %v855
    %v857 = vpop.f32.mrb[0].mxu0
    %858 = vdwg.mxu0
    %vm859 = vcmp.eq.s32.totalorder %v522, 3
    %v860 = vsel %vm859, %v856, 0.0
    %v861 = vadd.f32 %v778, %v860
    %v862 = vrot.slane %v69, 7
    %v864 = vadd.f32 %v518, %v862
    %v865 = vlaneseq
    %v866 = vshrl.u32 %v865, 7
    %v867 = vsub.s32 4, %v866
    %v868 = vrot.slane %v864, %v867
    %v869 = vadd.f32 %v448, %v868
    %v870 = vmax.f32 %v869, 0.0
    %v872 = vsel %vm77, %v870, 0
    %874 = vmatprep.subr.mxu0 0.0
    %875 = vmatpush1.msra.mxu0 %v65
    %876 = vmatprep.subr.mxu0 0.0
    %877 = vmatpush1.msra.mxu0 %v66
    %878 = vmatprep.subr.mxu0 0.0
    %879 = vmatpush1.msra.mxu0 %v67
    %880 = vmatprep.subr.mxu0 0.0
    %881 = vmatpush1.msra.mxu0 %v68
    %882 = vmatprep.subr.mxu0 0.0
    %883 = vmatpush1.msra.mxu0 0.0
    %884 = vmatprep.subr.mxu0 0.0
    %885 = vmatpush1.msra.mxu0 0.0
    %886 = vmatprep.subr.mxu0 0.0
    %887 = vmatpush1.msra.mxu0 0.0
    %888 = vmatprep.subr.mxu0 0.0
    %889 = vmatpush1.msra.mxu0 0.0
    %890 = vmatprep.subr.mxu0 0.0
    %891 = vmatpush1.msra.mxu0 0.0
    %892 = vmatprep.subr.mxu0 0.0
    %893 = vmatpush1.msra.mxu0 0.0
    %894 = vmatprep.subr.mxu0 0.0
    %895 = vmatpush1.msra.mxu0 0.0
    %896 = vmatprep.subr.mxu0 0.0
    %897 = vmatpush1.msra.mxu0 0.0
    %898 = vmatprep.subr.mxu0 0.0
    %899 = vmatpush1.msra.mxu0 0.0
    %900 = vmatprep.subr.mxu0 0.0
    %901 = vmatpush1.msra.mxu0 0.0
    %902 = vmatprep.subr.mxu0 0.0
    %903 = vmatpush1.msra.mxu0 0.0
    %904 = vmatprep.subr.mxu0 0.0
    %905 = vmatpush1.msra.mxu0 0.0
    %906 = vmatprep.subr.mxu0 0.0
    %907 = vmatpush1.msra.mxu0 0.0
    %908 = vmatprep.subr.mxu0 0.0
    %909 = vmatpush1.msra.mxu0 0.0
    %910 = vmatprep.subr.mxu0 0.0
    %911 = vmatpush1.msra.mxu0 0.0
    %912 = vmatprep.subr.mxu0 0.0
    %913 = vmatpush1.msra.mxu0 0.0
    %914 = vmatprep.subr.mxu0 0.0
    %915 = vmatpush1.msra.mxu0 0.0
    %916 = vmatprep.subr.mxu0 0.0
    %917 = vmatpush1.msra.mxu0 0.0
    %918 = vmatprep.subr.mxu0 0.0
    %919 = vmatpush1.msra.mxu0 0.0
    %920 = vmatprep.subr.mxu0 0.0
    %921 = vmatpush1.msra.mxu0 0.0
    %922 = vmatprep.subr.mxu0 0.0
    %923 = vmatpush1.msra.mxu0 0.0
    %924 = vmatprep.subr.mxu0 0.0
    %925 = vmatpush1.msra.mxu0 0.0
    %926 = vmatprep.subr.mxu0 0.0
    %927 = vmatpush1.msra.mxu0 0.0
    %928 = vmatprep.subr.mxu0 0.0
    %929 = vmatpush1.msra.mxu0 0.0
    %930 = vmatprep.subr.mxu0 0.0
    %931 = vmatpush1.msra.mxu0 0.0
    %932 = vmatprep.subr.mxu0 0.0
    %933 = vmatpush1.msra.mxu0 0.0
    %934 = vmatprep.subr.mxu0 0.0
    %935 = vmatpush1.msra.mxu0 0.0
    %936 = vmatprep.subr.mxu0 0.0
    %937 = vmatpush1.msra.mxu0 0.0
    %938 = vmatprep.mubr.f32.mxu0 0.0
    %939 = vmatmul.mubr.f32.gmra.mrb[0].mxu0 %v872
    %v940 = vpop.f32.mrb[0].mxu0
    %v941 = vadd.f32 0.0, %v940
    %v942 = vpop.f32.mrb[0].mxu0
    %943 = vdwg.mxu0
    %vm944 = vcmp.eq.s32.totalorder %v522, 4
    %v945 = vsel %vm944, %v941, 0.0
    %v946 = vadd.f32 %v861, %v945
    %s947 = sld [smem:[#allocation2]]
    %v948 = vstv %s947
    %v949 = vadd.f32 %v946, %v948
    %950 = vst [vmem:[%s3] sm:$0xff] %v949
    // Predicated region
    $region18: #{crnet_forward.1} parent=1 // pred_check
      _
    $region19: #{crnet_forward.1} parent=1 // pred_check_branch
      %952 = sbr.rel (0) target = $region21
    $region20: #{crnet_forward.1} parent=1 // pred_region
      _
    $region21: #{crnet_forward.1} parent=1 // pred_fallthru
      _
    // Predicated region
    $region22: #{crnet_forward.1} parent=1 // pred_check
      _
    $region23: #{crnet_forward.1} parent=1 // pred_check_branch
      %954 = sbr.rel (0) target = $region25
    $region24: #{crnet_forward.1} parent=1 // pred_region
      _
    $region25: #{crnet_forward.1} parent=1 // pred_fallthru
      _
    %955 = vsyncpa [#allocation4], 1

</llo_original>
